<compile_context>
chip_gen: v5e
topology: v5e:2x2
jax: 0.10.0
libtpu: 0.0.40
codegen_flags: <defaults>
</compile_context>

<pallas_src>
import functools
from typing import List, NamedTuple

import jax
import jax.numpy as jnp
from jax import lax
from jax.experimental import pallas as pl
from jax.experimental.pallas import tpu as pltpu


# ----------------------------------------------------------------------------
# helpers
# ----------------------------------------------------------------------------
def _round_up(x: int, m: int) -> int:
    return ((x + m - 1) // m) * m


def _choose_row_tile(n_rows: int):
    """Returns (tile_rows, padded_rows).  tile_rows is a multiple of 8 sublanes;
    for large batches use 256/512-row tiles so the BlockSpec pipeline
    double-buffers and (on v7x) both TensorCores get >=2 grid steps."""
    n8 = _round_up(max(n_rows, 8), 8)
    if n8 <= 512:
        return n8, n8                      # single block == full (padded) array
    tile = 256 if n8 <= 4096 else 512
    return tile, _round_up(n8, tile)


# ----------------------------------------------------------------------------
# Fused Pallas kernel: one-hot(all cats) @ Wcat + conts @ Wcont + b
#                      -> leaky_relu(0.5) -> per-source dropout -> lane-dense out
# ----------------------------------------------------------------------------
def _combiner_kernel(vocab_sizes, cats_ref, conts_ref, drop_ref,
                     wcat_ref, wcont_ref, b_ref, sel_ref, o_ref):
    # cats_ref : [tn, C]        int32 categorical indices (all sources, col-major order)
    # conts_ref: [tn, CT]       continuous features (all sources), compute dtype
    # drop_ref : [tn, S]        f32 per-(row, source) dropout indicator (1 = drop)
    # wcat_ref : [V_total, Ep]  block-diag folded weights  (table @ W per cat column)
    # wcont_ref: [CT, Ep]       block-diag cont weights
    # b_ref    : [1, Ep]        f32 bias (zeros in the padding lanes)
    # sel_ref  : [S, Ep]        f32 source->output-lane selection matrix
    # o_ref    : [tn, Ep]       f32 lane-dense output (Ep = tot_E rounded up to 128)
    tn = o_ref.shape[0]
    v_total = wcat_ref.shape[0]
    cdt = conts_ref.dtype

    cats = cats_ref[...]                                            # [tn, C] int32

    # One-hot of ALL categorical columns at once, [tn, V_total], without any
    # minor-dim concat: column c owns lanes [off_c, off_c + vocab_c) and lights
    # lane off_c + cats[:, c].
    giota = lax.broadcasted_iota(jnp.int32, (tn, v_total), 1)
    onehot = jnp.zeros((tn, v_total), jnp.float32)
    off = 0
    for c, v in enumerate(vocab_sizes):
        local = giota - off
        hit = (local == cats[:, c:c + 1]) & (local >= 0) & (local < v)
        onehot = onehot + hit.astype(jnp.float32)
        off += v

    # Block-diagonal packed matmuls; f32 accumulation on the MXU.
    y = jnp.dot(onehot.astype(cdt), wcat_ref[...],
                preferred_element_type=jnp.float32)
    y = y + jnp.dot(conts_ref[...], wcont_ref[...],
                    preferred_element_type=jnp.float32)
    y = y + b_ref[...]

    # F.leaky_relu(y, negative_slope=0.5) — f32 epilogue (v5e-friendly).
    y = jnp.where(y >= 0.0, y, 0.5 * y)

    # Per-(row, source) dropout -> per-output-lane keep factor (padding lanes -> 1).
    keep = 1.0 - jnp.dot(drop_ref[...], sel_ref[...],
                         preferred_element_type=jnp.float32)
    o_ref[...] = (y * keep).astype(o_ref.dtype)


def _fused_embed_combine(cats_all, conts_all, drop, wcat, wcont, bias, sel,
                         vocab_sizes):
    """One pallas_call covering all data sources. Returns [n_rows, E_pad] f32."""
    n_rows, c_cols = cats_all.shape
    ct_cols = conts_all.shape[1]
    n_src = drop.shape[1]
    v_total, e_pad = wcat.shape
    in_sz = jnp.dtype(conts_all.dtype).itemsize

    tn, n_pad = _choose_row_tile(n_rows)
    if n_pad != n_rows:
        pad = ((0, n_pad - n_rows), (0, 0))
        cats_all = jnp.pad(cats_all, pad)      # index 0 is always a valid category
        conts_all = jnp.pad(conts_all, pad)
        drop = jnp.pad(drop, pad)

    # VMEM budget (double-buffered row blocks + resident weights) with headroom;
    # stays well under v7x's 64 MiB physical VMEM.
    blk_bytes = tn * (c_cols * 4 + ct_cols * in_sz + n_src * 4 + e_pad * 4)
    wgt_bytes = (v_total + ct_cols) * e_pad * in_sz + (1 + n_src) * e_pad * 4
    vmem_limit = int(min(48 * 2 ** 20, max(8 * 2 ** 20, 4 * blk_bytes + 2 * wgt_bytes)))

    cost = pl.CostEstimate(
        flops=2 * n_pad * (v_total + ct_cols + n_src) * e_pad,
        transcendentals=0,
        bytes_accessed=int(n_pad * (c_cols * 4 + ct_cols * in_sz + n_src * 4
                                    + e_pad * 4) + wgt_bytes),
    )

    out = pl.pallas_call(
        functools.partial(_combiner_kernel, vocab_sizes),
        out_shape=jax.ShapeDtypeStruct((n_pad, e_pad), jnp.float32),
        grid=(n_pad // tn,),
        in_specs=[
            pl.BlockSpec((tn, c_cols), lambda i: (i, 0)),      # cats
            pl.BlockSpec((tn, ct_cols), lambda i: (i, 0)),     # conts
            pl.BlockSpec((tn, n_src), lambda i: (i, 0)),       # dropout mask
            pl.BlockSpec((v_total, e_pad), lambda i: (0, 0)),  # folded cat weights
            pl.BlockSpec((ct_cols, e_pad), lambda i: (0, 0)),  # cont weights
            pl.BlockSpec((1, e_pad), lambda i: (0, 0)),        # bias
            pl.BlockSpec((n_src, e_pad), lambda i: (0, 0)),    # source->lane select
        ],
        out_specs=pl.BlockSpec((tn, e_pad), lambda i: (i, 0)),
        compiler_params=pltpu.CompilerParams(
            dimension_semantics=("parallel",),
            vmem_limit_bytes=vmem_limit,
        ),
        cost_estimate=cost,
    )(cats_all, conts_all, drop, wcat, wcont, bias, sel)
    return out[:n_rows]


# ----------------------------------------------------------------------------
# Parameter containers (deterministic synthetic init)
# ----------------------------------------------------------------------------
class SourceParams(NamedTuple):
    emb_tables: List[jnp.ndarray]   # one [vocab_c, E] table per categorical column
    w: jnp.ndarray                  # [Din, E]  (Din = n_cats*E + n_conts)
    b: jnp.ndarray                  # [1, E]


def make_source_params(key, cat_vocab_sizes, n_conts, embedding_size):
    keys = jax.random.split(key, len(cat_vocab_sizes) + 2)
    tables = [
        jax.random.normal(keys[c], (v, embedding_size), jnp.float32) * 0.1
        for c, v in enumerate(cat_vocab_sizes)
    ]
    din = len(cat_vocab_sizes) * embedding_size + n_conts
    w = jax.random.normal(keys[-2], (din, embedding_size), jnp.float32) * (1.0 / jnp.sqrt(din))
    b = jax.random.normal(keys[-1], (1, embedding_size), jnp.float32) * 0.01
    return SourceParams(tables, w, b)


# ----------------------------------------------------------------------------
# DataSourcesCombiner forward
# ----------------------------------------------------------------------------
def data_sources_combiner_forward(params_list, cats_list, conts_list,
                                  sources_dropout_rate, dropout_key,
                                  *, compute_dtype=jnp.bfloat16):
    """
    params_list : list of SourceParams, one per DataSource
    cats_list   : list of int32  [N, n_cats_s] categorical index arrays
    conts_list  : list of f32    [N, n_conts_s] continuous feature arrays
    Returns (concatenated [N, sum(E_s)] f32, sources_dropouts [N, n_sources] f32).
    """
    n_rows = cats_list[0].shape[0]
    n_sources = len(params_list)

    # sources_dropouts = (rand(N, S) < rate).float() -- whole-source zeroing, no rescale
    u = jax.random.uniform(dropout_key, (n_rows, n_sources), jnp.float32)
    sources_dropouts = (u < sources_dropout_rate).astype(jnp.float32)

    # ---- fold parameters into block-diagonal operands (parameter-only math;
    #      tiny, and hoisted/fused by XLA under jit) ------------------------------
    e_sizes = [int(p.w.shape[1]) for p in params_list]
    tot_e = sum(e_sizes)
    e_pad = _round_up(tot_e, 128)                 # lane-dense output width

    vocab_sizes = []
    wcat_blocks, wcont_blocks = [], []            # (block, output-lane offset)
    cats_cols, conts_cols = [], []
    bias = jnp.zeros((1, e_pad), jnp.float32)
    sel = jnp.zeros((n_sources, e_pad), jnp.float32)

    e_off = 0
    for s_idx, (prm, cats, conts) in enumerate(zip(params_list, cats_list, conts_list)):
        e_s = int(prm.w.shape[1])
        r = 0
        for c, tbl in enumerate(prm.emb_tables):
            # emb_table @ W rows  ==  folded weight for the one-hot of this column
            wcat_blocks.append((tbl.astype(jnp.float32) @ prm.w[r:r + e_s, :], e_off))
            vocab_sizes.append(int(tbl.shape[0]))
            cats_cols.append(cats[:, c:c + 1].astype(jnp.int32))
            r += e_s
        n_conts = int(prm.w.shape[0]) - r
        if n_conts > 0:
            wcont_blocks.append((prm.w[r:, :].astype(jnp.float32), e_off))
            conts_cols.append(conts[:, :n_conts].astype(jnp.float32))
        bias = bias.at[0, e_off:e_off + e_s].set(prm.b[0])
        sel = sel.at[s_idx, e_off:e_off + e_s].set(1.0)
        e_off += e_s

    # Assemble block-diagonal weights (f32), then cast matmul inputs to compute dtype.
    v_total = sum(vocab_sizes)
    if v_total > 0:
        wcat = jnp.zeros((v_total, e_pad), jnp.float32)
        row = 0
        for blk, off in wcat_blocks:
            wcat = wcat.at[row:row + blk.shape[0], off:off + blk.shape[1]].set(blk)
            row += blk.shape[0]
        cats_all = jnp.concatenate(cats_cols, axis=1)
    else:   # no categorical columns anywhere: dummy zero column with zero weight
        vocab_sizes = [1]
        wcat = jnp.zeros((1, e_pad), jnp.float32)
        cats_all = jnp.zeros((n_rows, 1), jnp.int32)

    ct_total = sum(int(b_.shape[0]) for b_, _ in wcont_blocks)
    if ct_total > 0:
        wcont = jnp.zeros((ct_total, e_pad), jnp.float32)
        row = 0
        for blk, off in wcont_blocks:
            wcont = wcont.at[row:row + blk.shape[0], off:off + blk.shape[1]].set(blk)
            row += blk.shape[0]
        conts_all = jnp.concatenate(conts_cols, axis=1)
    else:   # no continuous columns anywhere: dummy zero column with zero weight
        wcont = jnp.zeros((1, e_pad), jnp.float32)
        conts_all = jnp.zeros((n_rows, 1), jnp.float32)

    wcat = wcat.astype(compute_dtype)
    wcont = wcont.astype(compute_dtype)
    conts_all = conts_all.astype(compute_dtype)

    out_padded = _fused_embed_combine(cats_all, conts_all, sources_dropouts,
                                      wcat, wcont, bias, sel, tuple(vocab_sizes))
    concatenated = out_padded[:, :tot_e]
    return concatenated, sources_dropouts


# ----------------------------------------------------------------------------
# Demo
# ----------------------------------------------------------------------------
if __name__ == "__main__":
    key = jax.random.PRNGKey(0)
    (k_p0, k_p1, k_cat0a, k_cat0b, k_cont0, k_cat1, k_cont1, k_drop) = jax.random.split(key, 8)

    N = 8  # batch (number of inds)

    # Source 0: 2 categorical columns (vocab 5, 7), 3 continuous cols, E=16
    params0 = make_source_params(k_p0, cat_vocab_sizes=(5, 7), n_conts=3, embedding_size=16)
    cats0 = jnp.stack(
        [jax.random.randint(k_cat0a, (N,), 0, 5, jnp.int32),
         jax.random.randint(k_cat0b, (N,), 0, 7, jnp.int32)], axis=1)        # [8, 2]
    conts0 = jax.random.normal(k_cont0, (N, 3), jnp.float32)                  # [8, 3]

    # Source 1: 1 categorical column (vocab 4), 2 continuous cols, E=8
    params1 = make_source_params(k_p1, cat_vocab_sizes=(4,), n_conts=2, embedding_size=8)
    cats1 = jax.random.randint(k_cat1, (N, 1), 0, 4, jnp.int32)               # [8, 1]
    conts1 = jax.random.normal(k_cont1, (N, 2), jnp.float32)                  # [8, 2]

    params_list = [params0, params1]
    cats_list = [cats0, cats1]
    conts_list = [conts0, conts1]
    tot_embeddings_size = sum(int(p.w.shape[1]) for p in params_list)

    fwd = jax.jit(data_sources_combiner_forward, static_argnames=("compute_dtype",))

    # bf16 MXU inputs (recommended on v6e/v7x), f32 accumulate + epilogue.
    concat_bf16, sources_dropouts = fwd(params_list, cats_list, conts_list,
                                        0.5, k_drop, compute_dtype=jnp.bfloat16)
    # f32 everywhere (tight numerical check vs the module-style reference).
    concat_f32, drops_f32 = fwd(params_list, cats_list, conts_list,
                                0.5, k_drop, compute_dtype=jnp.float32)
    concat_bf16, concat_f32, sources_dropouts, drops_f32 = jax.block_until_ready(
        (concat_bf16, concat_f32, sources_dropouts, drops_f32))

    assert concat_bf16.shape == (N, tot_embeddings_size)
    assert concat_f32.shape == (N, tot_embeddings_size)
    assert sources_dropouts.shape == (N, len(params_list))
    assert jnp.array_equal(sources_dropouts, drops_f32)

    # Pure-JAX f32 reference of the module's forward:
    # gather -> concat -> Linear -> leaky_relu(0.5) -> per-source dropout -> concat.
    def ref_forward(mask):
        outs = []
        for i, (prm, cats, conts) in enumerate(zip(params_list, cats_list, conts_list)):
            pieces = [jnp.take(t, cats[:, c], axis=0) for c, t in enumerate(prm.emb_tables)]
            pieces.append(conts)
            x = jnp.concatenate(pieces, axis=1)
            y = x @ prm.w + prm.b
            y = jnp.where(y >= 0, y, 0.5 * y)
            outs.append(y * (1.0 - mask[:, i:i + 1]))
        return jnp.concatenate(outs, axis=1)

    ref = jax.block_until_ready(ref_forward(sources_dropouts))
    assert jnp.allclose(concat_f32, ref, atol=1e-4, rtol=1e-4), "f32 kernel mismatch"
    assert jnp.allclose(concat_bf16, ref, atol=5e-2, rtol=5e-2), "bf16 kernel mismatch"

    print("KERNEL_OK")
</pallas_src>

<mosaic_0001>
module attributes {stable_mosaic.version = 11 : i64} {
  func.func @_combiner_kernel(%arg0: i32, %arg1: memref<8x3xi32, #tpu.memory_space<vmem>>, %arg2: memref<8x5xbf16, #tpu.memory_space<vmem>>, %arg3: memref<8x2xf32, #tpu.memory_space<vmem>>, %arg4: memref<16x128xbf16, #tpu.memory_space<vmem>>, %arg5: memref<5x128xbf16, #tpu.memory_space<vmem>>, %arg6: memref<1x128xf32, #tpu.memory_space<vmem>>, %arg7: memref<2x128xf32, #tpu.memory_space<vmem>>, %arg8: memref<8x128xf32, #tpu.memory_space<vmem>>) attributes {dimension_semantics = [#tpu.dimension_semantics<parallel>], iteration_bounds = array<i64: 1>, scalar_prefetch = 0 : i64, scratch_operands = 0 : i64, tpu.core_type = #tpu.core_type<tc>, window_params = [{transform_indices = @transform_0, window_bounds = array<i64: 8, 3>}, {transform_indices = @transform_1, window_bounds = array<i64: 8, 5>}, {transform_indices = @transform_2, window_bounds = array<i64: 8, 2>}, {pipeline_mode = #tpu.pipeline_mode<synchronous>, transform_indices = @transform_3, window_bounds = array<i64: 16, 128>}, {pipeline_mode = #tpu.pipeline_mode<synchronous>, transform_indices = @transform_4, window_bounds = array<i64: 5, 128>}, {pipeline_mode = #tpu.pipeline_mode<synchronous>, transform_indices = @transform_5, window_bounds = array<i64: 1, 128>}, {pipeline_mode = #tpu.pipeline_mode<synchronous>, transform_indices = @transform_6, window_bounds = array<i64: 2, 128>}, {transform_indices = @transform_7, window_bounds = array<i64: 8, 128>}]} {
    %c0 = arith.constant 0 : index
    %c0_0 = arith.constant 0 : index
    %0 = vector.load %arg1[%c0, %c0_0] : memref<8x3xi32, #tpu.memory_space<vmem>>, vector<8x3xi32>
    %1 = tpu.iota {dimensions = array<i32: 1>} : vector<8x16xi32>
    %cst = arith.constant 0.000000e+00 : f32
    %2 = vector.broadcast %cst : f32 to vector<8x16xf32>
    %c0_i32 = arith.constant 0 : i32
    %3 = vector.broadcast %c0_i32 : i32 to vector<8x16xi32>
    %4 = arith.subi %1, %3 : vector<8x16xi32>
    %5 = vector.extract_strided_slice %0 {offsets = [0, 0], sizes = [8, 1], strides = [1, 1]} : vector<8x3xi32> to vector<8x1xi32>
    %6 = vector.broadcast %5 : vector<8x1xi32> to vector<8x16xi32>
    %7 = arith.cmpi eq, %4, %6 : vector<8x16xi32>
    %c0_i32_1 = arith.constant 0 : i32
    %8 = vector.broadcast %c0_i32_1 : i32 to vector<8x16xi32>
    %9 = arith.cmpi sge, %4, %8 : vector<8x16xi32>
    %10 = arith.andi %7, %9 : vector<8x16xi1>
    %c5_i32 = arith.constant 5 : i32
    %11 = vector.broadcast %c5_i32 : i32 to vector<8x16xi32>
    %12 = arith.cmpi slt, %4, %11 : vector<8x16xi32>
    %13 = arith.andi %10, %12 : vector<8x16xi1>
    %14 = arith.extui %13 : vector<8x16xi1> to vector<8x16xi32>
    %15 = arith.sitofp %14 : vector<8x16xi32> to vector<8x16xf32>
    %16 = arith.addf %2, %15 : vector<8x16xf32>
    %c5_i32_2 = arith.constant 5 : i32
    %17 = vector.broadcast %c5_i32_2 : i32 to vector<8x16xi32>
    %18 = arith.subi %1, %17 : vector<8x16xi32>
    %19 = vector.extract_strided_slice %0 {offsets = [0, 1], sizes = [8, 1], strides = [1, 1]} : vector<8x3xi32> to vector<8x1xi32>
    %20 = vector.broadcast %19 : vector<8x1xi32> to vector<8x16xi32>
    %21 = arith.cmpi eq, %18, %20 : vector<8x16xi32>
    %c0_i32_3 = arith.constant 0 : i32
    %22 = vector.broadcast %c0_i32_3 : i32 to vector<8x16xi32>
    %23 = arith.cmpi sge, %18, %22 : vector<8x16xi32>
    %24 = arith.andi %21, %23 : vector<8x16xi1>
    %c7_i32 = arith.constant 7 : i32
    %25 = vector.broadcast %c7_i32 : i32 to vector<8x16xi32>
    %26 = arith.cmpi slt, %18, %25 : vector<8x16xi32>
    %27 = arith.andi %24, %26 : vector<8x16xi1>
    %28 = arith.extui %27 : vector<8x16xi1> to vector<8x16xi32>
    %29 = arith.sitofp %28 : vector<8x16xi32> to vector<8x16xf32>
    %30 = arith.addf %16, %29 : vector<8x16xf32>
    %c12_i32 = arith.constant 12 : i32
    %31 = vector.broadcast %c12_i32 : i32 to vector<8x16xi32>
    %32 = arith.subi %1, %31 : vector<8x16xi32>
    %33 = vector.extract_strided_slice %0 {offsets = [0, 2], sizes = [8, 1], strides = [1, 1]} : vector<8x3xi32> to vector<8x1xi32>
    %34 = vector.broadcast %33 : vector<8x1xi32> to vector<8x16xi32>
    %35 = arith.cmpi eq, %32, %34 : vector<8x16xi32>
    %c0_i32_4 = arith.constant 0 : i32
    %36 = vector.broadcast %c0_i32_4 : i32 to vector<8x16xi32>
    %37 = arith.cmpi sge, %32, %36 : vector<8x16xi32>
    %38 = arith.andi %35, %37 : vector<8x16xi1>
    %c4_i32 = arith.constant 4 : i32
    %39 = vector.broadcast %c4_i32 : i32 to vector<8x16xi32>
    %40 = arith.cmpi slt, %32, %39 : vector<8x16xi32>
    %41 = arith.andi %38, %40 : vector<8x16xi1>
    %42 = arith.extui %41 : vector<8x16xi1> to vector<8x16xi32>
    %43 = arith.sitofp %42 : vector<8x16xi32> to vector<8x16xf32>
    %44 = arith.addf %30, %43 : vector<8x16xf32>
    %45 = arith.truncf %44 : vector<8x16xf32> to vector<8x16xbf16>
    %c0_5 = arith.constant 0 : index
    %c0_6 = arith.constant 0 : index
    %46 = vector.load %arg4[%c0_5, %c0_6] : memref<16x128xbf16, #tpu.memory_space<vmem>>, vector<16x128xbf16>
    %cst_7 = arith.constant dense<0.000000e+00> : vector<8x128xf32>
    %47 = tpu.matmul %45, %46, %cst_7 {dimension_numbers = #tpu.dot_dimension_numbers<[1], [0], [0], [1], [0, 0, 1, 1], [], []>} : vector<8x16xbf16>, vector<16x128xbf16>, vector<8x128xf32> -> vector<8x128xf32>
    %c0_8 = arith.constant 0 : index
    %c0_9 = arith.constant 0 : index
    %48 = vector.load %arg2[%c0_8, %c0_9] : memref<8x5xbf16, #tpu.memory_space<vmem>>, vector<8x5xbf16>
    %c0_10 = arith.constant 0 : index
    %c0_11 = arith.constant 0 : index
    %49 = vector.load %arg5[%c0_10, %c0_11] : memref<5x128xbf16, #tpu.memory_space<vmem>>, vector<5x128xbf16>
    %cst_12 = arith.constant dense<0.000000e+00> : vector<8x128xf32>
    %50 = tpu.matmul %48, %49, %cst_12 {dimension_numbers = #tpu.dot_dimension_numbers<[1], [0], [0], [1], [0, 0, 1, 1], [], []>} : vector<8x5xbf16>, vector<5x128xbf16>, vector<8x128xf32> -> vector<8x128xf32>
    %51 = arith.addf %47, %50 : vector<8x128xf32>
    %c0_13 = arith.constant 0 : index
    %c0_14 = arith.constant 0 : index
    %52 = vector.load %arg6[%c0_13, %c0_14] : memref<1x128xf32, #tpu.memory_space<vmem>>, vector<1x128xf32>
    %53 = vector.broadcast %52 : vector<1x128xf32> to vector<8x128xf32>
    %54 = arith.addf %51, %53 : vector<8x128xf32>
    %cst_15 = arith.constant 0.000000e+00 : f32
    %55 = vector.broadcast %cst_15 : f32 to vector<8x128xf32>
    %56 = arith.cmpf oge, %54, %55 : vector<8x128xf32>
    %cst_16 = arith.constant 5.000000e-01 : f32
    %57 = vector.broadcast %cst_16 : f32 to vector<8x128xf32>
    %58 = arith.mulf %57, %54 : vector<8x128xf32>
    %59 = arith.select %56, %54, %58 : vector<8x128xi1>, vector<8x128xf32>
    %c0_17 = arith.constant 0 : index
    %c0_18 = arith.constant 0 : index
    %60 = vector.load %arg3[%c0_17, %c0_18] : memref<8x2xf32, #tpu.memory_space<vmem>>, vector<8x2xf32>
    %c0_19 = arith.constant 0 : index
    %c0_20 = arith.constant 0 : index
    %61 = vector.load %arg7[%c0_19, %c0_20] : memref<2x128xf32, #tpu.memory_space<vmem>>, vector<2x128xf32>
    %cst_21 = arith.constant dense<0.000000e+00> : vector<8x128xf32>
    %62 = tpu.matmul %60, %61, %cst_21 {dimension_numbers = #tpu.dot_dimension_numbers<[1], [0], [0], [1], [0, 0, 1, 1], [], []>} : vector<8x2xf32>, vector<2x128xf32>, vector<8x128xf32> -> vector<8x128xf32>
    %cst_22 = arith.constant 1.000000e+00 : f32
    %63 = vector.broadcast %cst_22 : f32 to vector<8x128xf32>
    %64 = arith.subf %63, %62 : vector<8x128xf32>
    %65 = arith.mulf %59, %64 : vector<8x128xf32>
    %c0_23 = arith.constant 0 : index
    %c0_24 = arith.constant 0 : index
    %66 = vector.load %arg8[%c0_23, %c0_24] : memref<8x128xf32, #tpu.memory_space<vmem>>, vector<8x128xf32>
    tpu.vector_store %arg8[%c0_23, %c0_24], %65 {strides = array<i32>} : memref<8x128xf32, #tpu.memory_space<vmem>>, vector<8x128xf32>,
    return
  }
  func.func @transform_0(%arg0: i32) -> (i32, i32) {
    %c0_i32 = arith.constant 0 : i32
    %c0_i32_0 = arith.constant 0 : i32
    return %arg0, %c0_i32 : i32, i32
  }
  func.func @transform_1(%arg0: i32) -> (i32, i32) {
    %c0_i32 = arith.constant 0 : i32
    %c0_i32_0 = arith.constant 0 : i32
    return %arg0, %c0_i32 : i32, i32
  }
  func.func @transform_2(%arg0: i32) -> (i32, i32) {
    %c0_i32 = arith.constant 0 : i32
    %c0_i32_0 = arith.constant 0 : i32
    return %arg0, %c0_i32 : i32, i32
  }
  func.func @transform_3(%arg0: i32) -> (i32, i32) {
    %c0_i32 = arith.constant 0 : i32
    %c0_i32_0 = arith.constant 0 : i32
    %c0_i32_1 = arith.constant 0 : i32
    return %c0_i32, %c0_i32_0 : i32, i32
  }
  func.func @transform_4(%arg0: i32) -> (i32, i32) {
    %c0_i32 = arith.constant 0 : i32
    %c0_i32_0 = arith.constant 0 : i32
    %c0_i32_1 = arith.constant 0 : i32
    return %c0_i32, %c0_i32_0 : i32, i32
  }
  func.func @transform_5(%arg0: i32) -> (i32, i32) {
    %c0_i32 = arith.constant 0 : i32
    %c0_i32_0 = arith.constant 0 : i32
    %c0_i32_1 = arith.constant 0 : i32
    return %c0_i32, %c0_i32_0 : i32, i32
  }
  func.func @transform_6(%arg0: i32) -> (i32, i32) {
    %c0_i32 = arith.constant 0 : i32
    %c0_i32_0 = arith.constant 0 : i32
    %c0_i32_1 = arith.constant 0 : i32
    return %c0_i32, %c0_i32_0 : i32, i32
  }
  func.func @transform_7(%arg0: i32) -> (i32, i32) {
    %c0_i32 = arith.constant 0 : i32
    %c0_i32_0 = arith.constant 0 : i32
    return %arg0, %c0_i32 : i32, i32
  }
}

</mosaic_0001>

<llo_original>
// kernel: data_sources_combiner_forward.1
$region0: #{data_sources_combiner_forward.1}
  #allocation0 [shape = 'u32[]', space=smem, size = 0x4, offset = 0x4, fixed_abs, tag = 'smem constant byte address 0x4 - core index']
  #allocation1 [shape = 'u32[72,128]{1,0:T(1,128)}', space=vmem, size = 0x9000, scoped, tag = 'internal scratch']
  %s0 = inlined_call_operand.vmem [shape: s32[8,3], index: 0, kind: input, shape index: {}]
  %s1 = inlined_call_operand.vmem [shape: bf16[8,5], index: 1, kind: input, shape index: {}]
  %s2 = inlined_call_operand.vmem [shape: f32[8,2], index: 2, kind: input, shape index: {}]
  %s3 = inlined_call_operand.vmem [shape: bf16[16,128], index: 3, kind: input, shape index: {}]
  %s4 = inlined_call_operand.vmem [shape: bf16[5,128], index: 4, kind: input, shape index: {}]
  %s5 = inlined_call_operand.vmem [shape: f32[1,128], index: 5, kind: input, shape index: {}]
  %s6 = inlined_call_operand.vmem [shape: f32[2,128], index: 6, kind: input, shape index: {}]
  %s7 = inlined_call_operand.hbm [shape: f32[8,128], index: 7, kind: output, shape index: {}]
  %s8 = sld [smem:[#allocation0]]
  $region38: #{data_sources_combiner_forward.1} parent=0
    _
  %s10 = ssub.s32 1, %s8
  %s11 = scalar_select 0, %s10, %s8
  $region1: #{data_sources_combiner_forward.1} parent=0
    #allocation2 [shape = 'u8[4096]{0}', space=vmem, size = 0x1000, scoped, tag = 'output window, operand 0, single buffered']
    #allocation3 [shape = 's32[1]{0}', space=sflag, size = 0x4, scoped, tag = 'scoped memory for data_sources_combiner_forward.1']
    %12 = vsyncpa [#allocation3], 0
    // Predicated region
    $region2: #{data_sources_combiner_forward.1} parent=1 // pred_check
      _
    $region3: #{data_sources_combiner_forward.1} parent=1 // pred_check_branch
      %14 = sbr.rel (0) target = $region5
    $region4: #{data_sources_combiner_forward.1} parent=1 // pred_region
      _
    $region5: #{data_sources_combiner_forward.1} parent=1 // pred_fallthru
      _
    // Predicated region
    $region6: #{data_sources_combiner_forward.1} parent=1 // pred_check
      _
    $region7: #{data_sources_combiner_forward.1} parent=1 // pred_check_branch
      %16 = sbr.rel (0) target = $region9
    $region8: #{data_sources_combiner_forward.1} parent=1 // pred_region
      _
    $region9: #{data_sources_combiner_forward.1} parent=1 // pred_fallthru
      _
    // Predicated region
    $region10: #{data_sources_combiner_forward.1} parent=1 // pred_check
      _
    $region11: #{data_sources_combiner_forward.1} parent=1 // pred_check_branch
      %18 = sbr.rel (0) target = $region13
    $region12: #{data_sources_combiner_forward.1} parent=1 // pred_region
      _
    $region13: #{data_sources_combiner_forward.1} parent=1 // pred_fallthru
      _
    // Predicated region
    $region14: #{data_sources_combiner_forward.1} parent=1 // pred_check
      _
    $region15: #{data_sources_combiner_forward.1} parent=1 // pred_check_branch
      %20 = sbr.rel (0) target = $region17
    $region16: #{data_sources_combiner_forward.1} parent=1 // pred_region
      _
    $region17: #{data_sources_combiner_forward.1} parent=1 // pred_fallthru
      _
    // Predicated region
    $region18: #{data_sources_combiner_forward.1} parent=1 // pred_check
      _
    $region19: #{data_sources_combiner_forward.1} parent=1 // pred_check_branch
      %22 = sbr.rel (0) target = $region21
    $region20: #{data_sources_combiner_forward.1} parent=1 // pred_region
      _
    $region21: #{data_sources_combiner_forward.1} parent=1 // pred_fallthru
      _
    // Predicated region
    $region22: #{data_sources_combiner_forward.1} parent=1 // pred_check
      _
    $region23: #{data_sources_combiner_forward.1} parent=1 // pred_check_branch
      %24 = sbr.rel (0) target = $region25
    $region24: #{data_sources_combiner_forward.1} parent=1 // pred_region
      _
    $region25: #{data_sources_combiner_forward.1} parent=1 // pred_fallthru
      _
    // Predicated region
    $region26: #{data_sources_combiner_forward.1} parent=1 // pred_check
      _
    $region27: #{data_sources_combiner_forward.1} parent=1 // pred_check_branch
      %26 = sbr.rel (0) target = $region29
    $region28: #{data_sources_combiner_forward.1} parent=1 // pred_region
      _
    $region29: #{data_sources_combiner_forward.1} parent=1 // pred_fallthru
      _
    %v28 = vld [vmem:[%s0] sm:$0xff]
    %v29 = vlaneseq
    %v30 = vand.u32 %v29, 127
    %31 = vset.pattern.permute.xlu0 0
    %32 = vperm.xlu0 %31, %v28
    %v33 = vpop.permute.xlu0 %32
    %vm34 = vcmp.eq.s32.totalorder %v30, %v33
    %vm35 = vcmp.ge.s32.totalorder %v30, 0
    %vm36 = vmand %vm34, %vm35
    %vm37 = vcmp.lt.s32.totalorder %v30, 5
    %vm38 = vmand %vm36, %vm37
    %v39 = vsel %vm38, 1, 0
    %v40 = vcvt.s32.f32 %v39
    %v41 = vadd.f32 %v40, 0.0
    %v42 = vsub.s32 %v30, 5
    %43 = vset.pattern.permute.xlu0 1
    %44 = vperm.xlu0 %43, %v28
    %v45 = vpop.permute.xlu0 %44
    %vm46 = vcmp.eq.s32.totalorder %v42, %v45
    %vm47 = vcmp.ge.s32.totalorder %v42, 0
    %vm48 = vmand %vm46, %vm47
    %vm49 = vcmp.lt.s32.totalorder %v42, 7
    %vm50 = vmand %vm48, %vm49
    %v51 = vsel %vm50, 1, 0
    %v52 = vcvt.s32.f32 %v51
    %v53 = vadd.f32 %v41, %v52
    %v54 = vsub.s32 %v30, 12
    %55 = vset.pattern.permute.xlu0 2
    %56 = vperm.xlu0 %55, %v28
    %v57 = vpop.permute.xlu0 %56
    %vm58 = vcmp.eq.s32.totalorder %v54, %v57
    %vm59 = vcmp.ge.s32.totalorder %v54, 0
    %vm60 = vmand %vm58, %vm59
    %vm61 = vcmp.lt.s32.totalorder %v54, 4
    %vm62 = vmand %vm60, %vm61
    %v63 = vsel %vm62, 1, 0
    %v64 = vcvt.s32.f32 %v63
    %v65 = vadd.f32 %v53, %v64
    %v66 = vpack.c.bf16 %v65, %v65
    %v67 = vld [vmem:[%s3] sm:$0xf]
    %v68 = vld [vmem:[%s3 + $0x4] sm:$0xf]
    %v69 = vld [vmem:[%s1] sm:$0xf]
    %v70 = vld [vmem:[%s4] sm:$0x7]
    %vm71 = vcmask 39936
    %v73 = vsel %vm71, %v69, 0
    %vm75 = vcmask 1041408
    %vm76 = vcmask 1042432
    %v77 = vsel %vm75, 4294967295, 65535
    %v78 = vsel %vm76, %v77, 0
    %v80 = vand.u32 %v70, %v78
    %82 = vmatpush.bf16.msra.mxu0 0
    %83 = vmatpush.bf16.msra.mxu0 0
    %84 = vmatpush.bf16.msra.mxu0 0
    %85 = vmatpush.bf16.msra.mxu0 0
    %86 = vmatpush.bf16.msra.mxu0 0
    %87 = vmatpush.bf16.msra.mxu0 0
    %88 = vmatpush.bf16.msra.mxu0 0
    %89 = vmatpush.bf16.msra.mxu0 %v80
    %90 = vmatmul.bf16.gmra.mxu0 %v73
    %v91 = vpop.f32.mrf.mxu0
    %v92 = vadd.f32 0.0, %v91
    %v93 = vpop.f32.mrf.mxu0
    %94 = vdwg.mxu0
    %v97 = vunpack.c.l.b16 %v67
    %v98 = vunpack.c.l.b16 %v68
    %v99 = vpack.c.b16 %v98, %v97
    %vm101 = vcmask 130048
    %v103 = vsel %vm101, %v66, 0
    %105 = vmatpush.bf16.msra.mxu0 0
    %106 = vmatpush.bf16.msra.mxu0 0
    %107 = vmatpush.bf16.msra.mxu0 0
    %108 = vmatpush.bf16.msra.mxu0 0
    %109 = vmatpush.bf16.msra.mxu0 0
    %110 = vmatpush.bf16.msra.mxu0 0
    %111 = vmatpush.bf16.msra.mxu0 0
    %112 = vmatpush.bf16.msra.mxu0 %v99
    %113 = vmatmul.bf16.gmra.mxu0 %v103
    %v114 = vpop.f32.mrf.mxu0
    %v115 = vadd.f32 %v92, %v114
    %v116 = vpop.f32.mrf.mxu0
    %117 = vdwg.mxu0
    %v118 = vld [vmem:[%s5] sm:$0x1]
    %v120 = vperm.slane %v118, 0
    %v122 = vadd.f32 %v115, %v120
    %vm123 = vcmp.ge.f32.partialorder %v122, 0.0
    %v124 = vmul.f32 %v122, 0.5
    %v125 = vsel %vm123, %v122, %v124
    %v126 = vld [vmem:[%s2] sm:$0xff]
    %v127 = vld [vmem:[%s6] sm:$0x3]
    %vm128 = vcmask 15360
    %v130 = vsel %vm128, %v126, 0
    %v133 = vsel %vm75, %v127, 0
    %135 = vmatpush.msra.mxu0 0.0
    %136 = vmatpush.msra.mxu0 0.0
    %137 = vmatpush.msra.mxu0 0.0
    %138 = vmatpush.msra.mxu0 0.0
    %139 = vmatpush.msra.mxu0 0.0
    %140 = vmatpush.msra.mxu0 0.0
    %141 = vmatpush.msra.mxu0 0.0
    %142 = vmatpush.msra.mxu0 0.0
    %143 = vmatpush.msra.mxu0 0.0
    %144 = vmatpush.msra.mxu0 0.0
    %145 = vmatpush.msra.mxu0 0.0
    %146 = vmatpush.msra.mxu0 0.0
    %147 = vmatpush.msra.mxu0 0.0
    %148 = vmatpush.msra.mxu0 0.0
    %149 = vmatpush.msra.mxu0 0.0
    %150 = vmatpush.msra.mxu0 %v133
    %151 = vmatmul.f32.gmra.mxu0 %v130
    %v152 = vpop.f32.mrf.mxu0
    %v153 = vadd.f32 0.0, %v152
    %154 = vdwg.mxu0
    %v155 = vsub.f32 1.0, %v153
    %v156 = vmul.f32 %v125, %v155
    %157 = vst [vmem:[#allocation2] sm:$0xff] %v156
    // Predicated region
    $region30: #{data_sources_combiner_forward.1} parent=1 // pred_check
      _
    $region31: #{data_sources_combiner_forward.1} parent=1 // pred_check_branch
      %159 = sbr.rel (0) target = $region33
    $region32: #{data_sources_combiner_forward.1} parent=1 // pred_region
      %161 = vsyncadd [#allocation3], 0
      %s163 = sshll.u32 [#allocation2], 4
      %s164 = int_to_ptr.vmem [resolvable:$true] %s163
      %s165 = sshll.u32 %s7, 4
      %s166 = int_to_ptr.hbm [resolvable:$true] %s165
      %168 = dma.vmem_to_hbm [thread:$0]  %s164, 128, %s166, [#allocation3]
    $region33: #{data_sources_combiner_forward.1} parent=1 // pred_fallthru
      _
    // Predicated region
    $region34: #{data_sources_combiner_forward.1} parent=1 // pred_check
      _
    $region35: #{data_sources_combiner_forward.1} parent=1 // pred_check_branch
      %170 = sbr.rel (0) target = $region37
    $region36: #{data_sources_combiner_forward.1} parent=1 // pred_region
      %172 = dma.done [#allocation3], 128
    $region37: #{data_sources_combiner_forward.1} parent=1 // pred_fallthru
      _
    %173 = vsyncpa [#allocation3], 1

</llo_original>
